<compile_context>
chip_gen: v6e
topology: v6e:2x2x1
jax: 0.10.0
libtpu: 0.0.40
codegen_flags: <defaults>
</compile_context>

<pallas_src>
import jax
import jax.numpy as jnp
from jax.experimental import pallas as pl
from jax.experimental.pallas import tpu as pltpu


def _round_up(n, m):
    return ((n + m - 1) // m) * m


def _mlp_kernel(x_ref, p_ref, o_ref):
    # x_ref: (4, TB)   float32, batch along lanes
    # p_ref: (H, 8)    packed params: cols 0..3 = W1, 4 = b1, 5 = w2, 6 = b2, 7 = pad
    # o_ref: (1, TB)   lane-dense output row
    p = p_ref[...]

    # Layer 1 (4 -> H) on the VPU: the K=4 contraction as 4 broadcast mul-adds.
    # The (1, TB) x-row -> (H, TB) sublane broadcast is left to Mosaic layout
    # inference (a stride-0 broadcast load would move it into the vld slot,
    # but that API is not relied on here for portability).
    xt = x_ref[...]
    h = p[:, 0:1] * xt[0:1, :]
    for k in range(1, 4):  # tiny fixed trip count, unrolled at trace time
        h = h + p[:, k:k + 1] * xt[k:k + 1, :]
    h = jnp.maximum(h + p[:, 4:5], 0.0)                       # (H, TB)

    # Layer 2 (H -> 1): VPU multiply + sublane (XLU) reduction; an N=1 MXU
    # matmul would only add push/pop latency.
    out = jnp.sum(h * p[:, 5:6], axis=0, keepdims=True) + p[0:1, 6:7]
    o_ref[...] = out.astype(o_ref.dtype)                      # (1, TB)


def pack_params(params):
    """Pack w1 [H,4], b1 [H], w2 [H], b2 [] into a single (H, 8) block."""
    w1 = jnp.asarray(params["w1"], jnp.float32)
    b1 = jnp.asarray(params["b1"], jnp.float32).reshape(-1, 1)
    w2 = jnp.asarray(params["w2"], jnp.float32).reshape(-1, 1)
    b2 = jnp.asarray(params["b2"], jnp.float32).reshape(())
    H = w1.shape[0]
    return jnp.concatenate(
        [w1, b1, w2,
         jnp.full((H, 1), b2, jnp.float32),
         jnp.zeros((H, 1), jnp.float32)], axis=1)             # (H, 8)


def _forward_lane_major(x_t, packed, tb):
    """Run the kernel on lane-major input x_t of shape (4, b_pad), b_pad % tb == 0."""
    H = packed.shape[0]
    b_pad = x_t.shape[1]
    n_steps = b_pad // tb

    # VMEM budget: double-buffered x/out tiles + resident params + headroom for
    # the (H, tb) hidden materialization. Keep within v7x's 64 MiB physical.
    est_vmem = 4 * (2 * 4 * tb + 2 * tb + 2 * H * 8 + 4 * H * tb) + (2 << 20)
    vmem_limit = int(min(max(est_vmem, 32 * 1024 * 1024), 64 * 1024 * 1024))

    return pl.pallas_call(
        _mlp_kernel,
        out_shape=jax.ShapeDtypeStruct((1, b_pad), jnp.float32),
        grid=(n_steps,),
        in_specs=[
            pl.BlockSpec((4, tb), lambda i: (0, i)),          # x tile (software-pipelined)
            pl.BlockSpec((H, 8), lambda i: (0, 0)),           # packed params stay resident
        ],
        out_specs=pl.BlockSpec((1, tb), lambda i: (0, i)),    # lane-dense output
        compiler_params=pltpu.CompilerParams(
            dimension_semantics=("parallel",),
            vmem_limit_bytes=vmem_limit),
    )(x_t, packed)


def shallow_corrector_mlp(x, params, *, block_b=8192):
    """Forward pass of ShallowCorrectorMLP.

    x: [B, 4] float32
    params: dict with w1 [H,4], b1 [H], w2 [H], b2 []
    returns: [B, 1] float32
    """
    assert x.ndim == 2 and x.shape[1] == 4, x.shape
    B = x.shape[0]
    packed = pack_params(params)

    # Batch tiling: big lane tiles amortize the ~0.35 us per-step overhead;
    # keep >= 2 steps once B is big enough so "parallel" can use both v7x TCs;
    # derive the tile from B so padding waste is ~1.5%, not up to a full tile.
    B128 = _round_up(max(B, 1), 128)
    min_steps = 2 if B128 >= 2048 else 1
    n_steps = max(pl.cdiv(B128, block_b), min_steps)
    tb = _round_up(pl.cdiv(B128, n_steps), 128)
    b_pad = n_steps * tb

    # Lay the batch on the lane axis (single fused pad+transpose copy). A
    # producer that already emits [4, B_pad] can call _forward_lane_major
    # directly and skip this HBM round trip.
    x_t = jnp.pad(x.astype(jnp.float32), ((0, b_pad - B), (0, 0))).T   # (4, b_pad)

    out_row = _forward_lane_major(x_t, packed, tb)
    return out_row[0, :B].reshape(B, 1)


def init_params(key, num_hidden_units=32):
    """Deterministic init mimicking PyTorch Linear default (uniform +-1/sqrt(fan_in))."""
    H = num_hidden_units
    k1w, k1b, k2w, k2b = jax.random.split(key, 4)
    bound1 = 1.0 / jnp.sqrt(4.0)
    bound2 = 1.0 / jnp.sqrt(float(H))
    return {
        "w1": jax.random.uniform(k1w, (H, 4), jnp.float32, -bound1, bound1),  # PyTorch [H, 4]
        "b1": jax.random.uniform(k1b, (H,), jnp.float32, -bound1, bound1),
        "w2": jax.random.uniform(k2w, (H,), jnp.float32, -bound2, bound2),    # PyTorch [1, H]
        "b2": jax.random.uniform(k2b, (), jnp.float32, -bound2, bound2),
    }


def _reference(x, p):
    h = jnp.maximum(x @ p["w1"].T + p["b1"], 0.0)             # (B, H)
    return h @ p["w2"].reshape(-1, 1) + p["b2"]               # (B, 1)


if __name__ == "__main__":
    key = jax.random.PRNGKey(0)
    k_p, k_x1, k_x2 = jax.random.split(key, 3)

    H = 32
    params = init_params(k_p, num_hidden_units=H)

    # Small batch matching the module's typical use: single 128-lane tile.
    x_small = jax.random.normal(k_x1, (8, 4), dtype=jnp.float32)
    out_small = jax.block_until_ready(shallow_corrector_mlp(x_small, params))
    ref_small = _reference(x_small, params)
    assert out_small.shape == (8, 1), out_small.shape
    assert jnp.allclose(out_small, ref_small, atol=1e-5, rtol=1e-5), "small-batch mismatch"

    # Larger batch: exercises >= 2 grid steps (v7x sharding path) + pad/slice.
    x_big = jax.random.normal(k_x2, (2500, 4), dtype=jnp.float32)
    out_big = jax.block_until_ready(shallow_corrector_mlp(x_big, params))
    ref_big = _reference(x_big, params)
    assert out_big.shape == (2500, 1), out_big.shape
    assert jnp.allclose(out_big, ref_big, atol=1e-5, rtol=1e-5), "multi-tile mismatch"

    # Explicit small tile: same kernel over a longer grid.
    out_tiled = jax.block_until_ready(shallow_corrector_mlp(x_big, params, block_b=512))
    assert jnp.allclose(out_tiled, ref_big, atol=1e-5, rtol=1e-5), "tiled-grid mismatch"

    print("KERNEL_OK")
</pallas_src>

<mosaic_0001>
module attributes {stable_mosaic.version = 11 : i64} {
  func.func @_mlp_kernel(%arg0: i32, %arg1: memref<4x128xf32, #tpu.memory_space<vmem>>, %arg2: memref<32x8xf32, #tpu.memory_space<vmem>>, %arg3: memref<1x128xf32, #tpu.memory_space<vmem>>) attributes {dimension_semantics = [#tpu.dimension_semantics<parallel>], iteration_bounds = array<i64: 1>, scalar_prefetch = 0 : i64, scratch_operands = 0 : i64, tpu.core_type = #tpu.core_type<tc>, window_params = [{transform_indices = @transform_0, window_bounds = array<i64: 4, 128>}, {pipeline_mode = #tpu.pipeline_mode<synchronous>, transform_indices = @transform_1, window_bounds = array<i64: 32, 8>}, {transform_indices = @transform_2, window_bounds = array<i64: 1, 128>}]} {
    %c0 = arith.constant 0 : index
    %c0_0 = arith.constant 0 : index
    %0 = vector.load %arg2[%c0, %c0_0] : memref<32x8xf32, #tpu.memory_space<vmem>>, vector<32x8xf32>
    %c0_1 = arith.constant 0 : index
    %c0_2 = arith.constant 0 : index
    %1 = vector.load %arg1[%c0_1, %c0_2] : memref<4x128xf32, #tpu.memory_space<vmem>>, vector<4x128xf32>
    %2 = vector.extract_strided_slice %0 {offsets = [0, 0], sizes = [32, 1], strides = [1, 1]} : vector<32x8xf32> to vector<32x1xf32>
    %3 = vector.extract_strided_slice %1 {offsets = [0, 0], sizes = [1, 128], strides = [1, 1]} : vector<4x128xf32> to vector<1x128xf32>
    %4 = vector.broadcast %2 : vector<32x1xf32> to vector<32x128xf32>
    %5 = vector.broadcast %3 : vector<1x128xf32> to vector<32x128xf32>
    %6 = arith.mulf %4, %5 : vector<32x128xf32>
    %7 = vector.extract_strided_slice %0 {offsets = [0, 1], sizes = [32, 1], strides = [1, 1]} : vector<32x8xf32> to vector<32x1xf32>
    %8 = vector.extract_strided_slice %1 {offsets = [1, 0], sizes = [1, 128], strides = [1, 1]} : vector<4x128xf32> to vector<1x128xf32>
    %9 = vector.broadcast %7 : vector<32x1xf32> to vector<32x128xf32>
    %10 = vector.broadcast %8 : vector<1x128xf32> to vector<32x128xf32>
    %11 = arith.mulf %9, %10 : vector<32x128xf32>
    %12 = arith.addf %6, %11 : vector<32x128xf32>
    %13 = vector.extract_strided_slice %0 {offsets = [0, 2], sizes = [32, 1], strides = [1, 1]} : vector<32x8xf32> to vector<32x1xf32>
    %14 = vector.extract_strided_slice %1 {offsets = [2, 0], sizes = [1, 128], strides = [1, 1]} : vector<4x128xf32> to vector<1x128xf32>
    %15 = vector.broadcast %13 : vector<32x1xf32> to vector<32x128xf32>
    %16 = vector.broadcast %14 : vector<1x128xf32> to vector<32x128xf32>
    %17 = arith.mulf %15, %16 : vector<32x128xf32>
    %18 = arith.addf %12, %17 : vector<32x128xf32>
    %19 = vector.extract_strided_slice %0 {offsets = [0, 3], sizes = [32, 1], strides = [1, 1]} : vector<32x8xf32> to vector<32x1xf32>
    %20 = vector.extract_strided_slice %1 {offsets = [3, 0], sizes = [1, 128], strides = [1, 1]} : vector<4x128xf32> to vector<1x128xf32>
    %21 = vector.broadcast %19 : vector<32x1xf32> to vector<32x128xf32>
    %22 = vector.broadcast %20 : vector<1x128xf32> to vector<32x128xf32>
    %23 = arith.mulf %21, %22 : vector<32x128xf32>
    %24 = arith.addf %18, %23 : vector<32x128xf32>
    %25 = vector.extract_strided_slice %0 {offsets = [0, 4], sizes = [32, 1], strides = [1, 1]} : vector<32x8xf32> to vector<32x1xf32>
    %26 = vector.broadcast %25 : vector<32x1xf32> to vector<32x128xf32>
    %27 = arith.addf %24, %26 : vector<32x128xf32>
    %cst = arith.constant 0.000000e+00 : f32
    %28 = vector.broadcast %cst : f32 to vector<32x128xf32>
    %29 = arith.maximumf %27, %28 : vector<32x128xf32>
    %30 = vector.extract_strided_slice %0 {offsets = [0, 5], sizes = [32, 1], strides = [1, 1]} : vector<32x8xf32> to vector<32x1xf32>
    %31 = vector.broadcast %30 : vector<32x1xf32> to vector<32x128xf32>
    %32 = arith.mulf %29, %31 : vector<32x128xf32>
    %cst_3 = arith.constant dense<0.000000e+00> : vector<128xf32>
    %33 = vector.multi_reduction <add>, %32, %cst_3 [0] : vector<32x128xf32> to vector<128xf32>
    %34 = vector.shape_cast %33 : vector<128xf32> to vector<1x128xf32>
    %35 = vector.extract_strided_slice %0 {offsets = [0, 6], sizes = [1, 1], strides = [1, 1]} : vector<32x8xf32> to vector<1x1xf32>
    %36 = vector.broadcast %35 : vector<1x1xf32> to vector<1x128xf32>
    %37 = arith.addf %34, %36 : vector<1x128xf32>
    %c0_4 = arith.constant 0 : index
    %c0_5 = arith.constant 0 : index
    %38 = vector.load %arg3[%c0_4, %c0_5] : memref<1x128xf32, #tpu.memory_space<vmem>>, vector<1x128xf32>
    tpu.vector_store %arg3[%c0_4, %c0_5], %37 {strides = array<i32>} : memref<1x128xf32, #tpu.memory_space<vmem>>, vector<1x128xf32>,
    return
  }
  func.func @transform_0(%arg0: i32) -> (i32, i32) {
    %c0_i32 = arith.constant 0 : i32
    %c0_i32_0 = arith.constant 0 : i32
    return %c0_i32, %arg0 : i32, i32
  }
  func.func @transform_1(%arg0: i32) -> (i32, i32) {
    %c0_i32 = arith.constant 0 : i32
    %c0_i32_0 = arith.constant 0 : i32
    %c0_i32_1 = arith.constant 0 : i32
    return %c0_i32, %c0_i32_0 : i32, i32
  }
  func.func @transform_2(%arg0: i32) -> (i32, i32) {
    %c0_i32 = arith.constant 0 : i32
    %c0_i32_0 = arith.constant 0 : i32
    return %c0_i32, %arg0 : i32, i32
  }
}

</mosaic_0001>

<llo_original>
// kernel: tpu_custom_call.1
$region0: #{tpu_custom_call.1}
  #allocation0 [shape = 'u32[]', space=smem, size = 0x4, offset = 0x4, fixed_abs, tag = 'smem constant byte address 0x4 - core index']
  #allocation1 [shape = 'u32[144,128]{1,0:T(1,128)}', space=vmem, size = 0x12000, scoped, tag = 'internal scratch']
  %s0 = inlined_call_operand.vmem [shape: f32[4,128], index: 0, kind: input, shape index: {}]
  %s1 = inlined_call_operand.vmem [shape: f32[32,8], index: 1, kind: input, shape index: {}]
  %s2 = inlined_call_operand.hbm [shape: f32[1,128], index: 2, kind: output, shape index: {}]
  %s3 = sld [smem:[#allocation0]]
  $region18: #{tpu_custom_call.1} parent=0
    _
  %s5 = ssub.s32 1, %s3
  %s6 = scalar_select 0, %s5, %s3
  $region1: #{tpu_custom_call.1} parent=0
    #allocation2 [shape = 'u8[512]{0}', space=vmem, size = 0x400, scoped, tag = 'output window, operand 0, single buffered']
    #allocation3 [shape = 's32[1]{0}', space=sflag, size = 0x4, scoped, tag = 'scoped memory for tpu_custom_call.1']
    %7 = vsyncpa [#allocation3], 0
    // Predicated region
    $region2: #{tpu_custom_call.1} parent=1 // pred_check
      _
    $region3: #{tpu_custom_call.1} parent=1 // pred_check_branch
      %9 = sbr.rel (0) target = $region5
    $region4: #{tpu_custom_call.1} parent=1 // pred_region
      _
    $region5: #{tpu_custom_call.1} parent=1 // pred_fallthru
      _
    // Predicated region
    $region6: #{tpu_custom_call.1} parent=1 // pred_check
      _
    $region7: #{tpu_custom_call.1} parent=1 // pred_check_branch
      %11 = sbr.rel (0) target = $region9
    $region8: #{tpu_custom_call.1} parent=1 // pred_region
      _
    $region9: #{tpu_custom_call.1} parent=1 // pred_fallthru
      _
    %v12 = vld [vmem:[%s1] sm:$0xff]
    %v13 = vld [vmem:[%s1 + $0x8] sm:$0xff]
    %v14 = vld [vmem:[%s1 + $0x10] sm:$0xff]
    %v15 = vld [vmem:[%s1 + $0x18] sm:$0xff]
    %v16 = vld [vmem:[%s0] sm:$0xf]
    %18 = vset.pattern.permute.xlu0 0
    %19 = vperm.xlu0 %18, %v12
    %v20 = vpop.permute.xlu0 %19
    %23 = vset.pattern.permute.xlu0 0
    %24 = vperm.xlu0 %23, %v13
    %v25 = vpop.permute.xlu0 %24
    %28 = vset.pattern.permute.xlu0 0
    %29 = vperm.xlu0 %28, %v14
    %v30 = vpop.permute.xlu0 %29
    %33 = vset.pattern.permute.xlu0 0
    %34 = vperm.xlu0 %33, %v15
    %v35 = vpop.permute.xlu0 %34
    %v37 = vlaneseq
    %v38 = vshrl.u32 %v37, 7
    %v39 = vsub.s32 0, %v38
    %v40 = vrot.slane %v16, %v39
    %v41 = vmul.f32 %v20, %v40
    %v42 = vmul.f32 %v25, %v40
    %v43 = vmul.f32 %v30, %v40
    %v44 = vmul.f32 %v35, %v40
    %45 = vset.pattern.permute.xlu0 1
    %46 = vperm.xlu0 %45, %v12
    %v47 = vpop.permute.xlu0 %46
    %49 = vset.pattern.permute.xlu0 1
    %50 = vperm.xlu0 %49, %v13
    %v51 = vpop.permute.xlu0 %50
    %53 = vset.pattern.permute.xlu0 1
    %54 = vperm.xlu0 %53, %v14
    %v55 = vpop.permute.xlu0 %54
    %57 = vset.pattern.permute.xlu0 1
    %58 = vperm.xlu0 %57, %v15
    %v59 = vpop.permute.xlu0 %58
    %v61 = vlaneseq
    %v62 = vshrl.u32 %v61, 7
    %v63 = vsub.s32 1, %v62
    %v64 = vrot.slane %v16, %v63
    %v65 = vmul.f32 %v47, %v64
    %v66 = vmul.f32 %v51, %v64
    %v67 = vmul.f32 %v55, %v64
    %v68 = vmul.f32 %v59, %v64
    %v69 = vadd.f32 %v41, %v65
    %v70 = vadd.f32 %v42, %v66
    %v71 = vadd.f32 %v43, %v67
    %v72 = vadd.f32 %v44, %v68
    %73 = vset.pattern.permute.xlu0 2
    %74 = vperm.xlu0 %73, %v12
    %v75 = vpop.permute.xlu0 %74
    %77 = vset.pattern.permute.xlu0 2
    %78 = vperm.xlu0 %77, %v13
    %v79 = vpop.permute.xlu0 %78
    %81 = vset.pattern.permute.xlu0 2
    %82 = vperm.xlu0 %81, %v14
    %v83 = vpop.permute.xlu0 %82
    %85 = vset.pattern.permute.xlu0 2
    %86 = vperm.xlu0 %85, %v15
    %v87 = vpop.permute.xlu0 %86
    %v89 = vlaneseq
    %v90 = vshrl.u32 %v89, 7
    %v91 = vsub.s32 2, %v90
    %v92 = vrot.slane %v16, %v91
    %v93 = vmul.f32 %v75, %v92
    %v94 = vmul.f32 %v79, %v92
    %v95 = vmul.f32 %v83, %v92
    %v96 = vmul.f32 %v87, %v92
    %v97 = vadd.f32 %v69, %v93
    %v98 = vadd.f32 %v70, %v94
    %v99 = vadd.f32 %v71, %v95
    %v100 = vadd.f32 %v72, %v96
    %101 = vset.pattern.permute.xlu0 3
    %102 = vperm.xlu0 %101, %v12
    %v103 = vpop.permute.xlu0 %102
    %105 = vset.pattern.permute.xlu0 3
    %106 = vperm.xlu0 %105, %v13
    %v107 = vpop.permute.xlu0 %106
    %109 = vset.pattern.permute.xlu0 3
    %110 = vperm.xlu0 %109, %v14
    %v111 = vpop.permute.xlu0 %110
    %113 = vset.pattern.permute.xlu0 3
    %114 = vperm.xlu0 %113, %v15
    %v115 = vpop.permute.xlu0 %114
    %v117 = vlaneseq
    %v118 = vshrl.u32 %v117, 7
    %v119 = vsub.s32 3, %v118
    %v120 = vrot.slane %v16, %v119
    %v121 = vmul.f32 %v103, %v120
    %v122 = vmul.f32 %v107, %v120
    %v123 = vmul.f32 %v111, %v120
    %v124 = vmul.f32 %v115, %v120
    %v125 = vadd.f32 %v97, %v121
    %v126 = vadd.f32 %v98, %v122
    %v127 = vadd.f32 %v99, %v123
    %v128 = vadd.f32 %v100, %v124
    %129 = vset.pattern.permute.xlu0 4
    %130 = vperm.xlu0 %129, %v12
    %v131 = vpop.permute.xlu0 %130
    %133 = vset.pattern.permute.xlu0 4
    %134 = vperm.xlu0 %133, %v13
    %v135 = vpop.permute.xlu0 %134
    %137 = vset.pattern.permute.xlu0 4
    %138 = vperm.xlu0 %137, %v14
    %v139 = vpop.permute.xlu0 %138
    %141 = vset.pattern.permute.xlu0 4
    %142 = vperm.xlu0 %141, %v15
    %v143 = vpop.permute.xlu0 %142
    %v145 = vadd.f32 %v125, %v131
    %v146 = vadd.f32 %v126, %v135
    %v147 = vadd.f32 %v127, %v139
    %v148 = vadd.f32 %v128, %v143
    %v149 = vmax.f32 %v145, 0.0
    %v150 = vmax.f32 %v146, 0.0
    %v151 = vmax.f32 %v147, 0.0
    %v152 = vmax.f32 %v148, 0.0
    %153 = vset.pattern.permute.xlu0 5
    %154 = vperm.xlu0 %153, %v12
    %v155 = vpop.permute.xlu0 %154
    %157 = vset.pattern.permute.xlu0 5
    %158 = vperm.xlu0 %157, %v13
    %v159 = vpop.permute.xlu0 %158
    %161 = vset.pattern.permute.xlu0 5
    %162 = vperm.xlu0 %161, %v14
    %v163 = vpop.permute.xlu0 %162
    %165 = vset.pattern.permute.xlu0 5
    %166 = vperm.xlu0 %165, %v15
    %v167 = vpop.permute.xlu0 %166
    %v169 = vmul.f32 %v149, %v155
    %v170 = vmul.f32 %v150, %v159
    %v171 = vmul.f32 %v151, %v163
    %v172 = vmul.f32 %v152, %v167
    %v173 = vadd.f32 %v169, %v170
    %v174 = vadd.f32 %v173, %v171
    %v175 = vadd.f32 %v174, %v172
    %v176 = vrot.slane %v175, 4
    %v177 = vadd.f32 %v175, %v176
    %v178 = vrot.slane %v177, 2
    %v179 = vadd.f32 %v177, %v178
    %v180 = vrot.slane %v179, 1
    %v181 = vadd.f32 %v179, %v180
    %182 = vset.pattern.permute.xlu0 6
    %183 = vperm.xlu0 %182, %v12
    %v184 = vpop.permute.xlu0 %183
    %v186 = vadd.f32 %v181, %v184
    %187 = vst [vmem:[#allocation2] sm:$0x1] %v186
    // Predicated region
    $region10: #{tpu_custom_call.1} parent=1 // pred_check
      _
    $region11: #{tpu_custom_call.1} parent=1 // pred_check_branch
      %189 = sbr.rel (0) target = $region13
    $region12: #{tpu_custom_call.1} parent=1 // pred_region
      %s191 = ssub.s32 16, 16
      %192 = vsyncadd [#allocation3], %s191
      %s194 = sshll.u32 [#allocation2], 4
      %s195 = int_to_ptr.vmem [resolvable:$true] %s194
      %197 = dma.vmem_to_hbm [thread:$0]  %s195, 16, %s2, [#allocation3]
    $region13: #{tpu_custom_call.1} parent=1 // pred_fallthru
      _
    // Predicated region
    $region14: #{tpu_custom_call.1} parent=1 // pred_check
      _
    $region15: #{tpu_custom_call.1} parent=1 // pred_check_branch
      %199 = sbr.rel (0) target = $region17
    $region16: #{tpu_custom_call.1} parent=1 // pred_region
      %200 = dma.done [#allocation3], 16
    $region17: #{tpu_custom_call.1} parent=1 // pred_fallthru
      _
    %201 = vsyncpa [#allocation3], 1

</llo_original>
